<compile_context>
chip_gen: v7x
topology: tpu7x:2x2x1
jax: 0.10.0
libtpu: 0.0.40
codegen_flags: <defaults>
</compile_context>

<pallas_src>
import functools

import jax
import jax.numpy as jnp
from jax.experimental import pallas as pl
from jax.experimental.pallas import tpu as pltpu


def _round_up(x, m):
    return ((x + m - 1) // m) * m


# -----------------------------------------------------------------------------
# Pallas kernel: (folded prompt-add) + shared MLP (1x1 convs) + max-pool over K
# -----------------------------------------------------------------------------
def _sa_mlp_pool_kernel(x_ref, rb_ref, w1_ref, w2_ref, b2_ref, o_ref, *, tm, kk):
    # x_ref : (tm*kk, C1p) bf16  -- grouped features, channels padded to 128 lanes
    # rb_ref: (tm, Hp)     f32   -- per-output-point bias = W1 @ prompt_term + b1
    # o_ref : (tm, C2p)    f32   -- lane-dense (C2 padded to 128)
    x = x_ref[...]
    # layer 1: 1x1 conv == matmul over channels (MXU, bf16 in / f32 accumulate)
    h = jnp.dot(x, w1_ref[...], preferred_element_type=jnp.float32)       # (tm*kk, Hp)
    hp = h.shape[-1]
    # folded prompt-add + conv bias, broadcast over the K neighbour axis.
    # (K padded to a multiple of 8 in the wrapper -> these reshapes are layout no-ops)
    h = h.reshape(tm, kk, hp) + rb_ref[...][:, None, :]
    h = jnp.maximum(h, 0.0)                                               # ReLU (f32, VPU)
    # layer 2
    h = h.reshape(tm * kk, hp).astype(jnp.bfloat16)
    y = jnp.dot(h, w2_ref[...], preferred_element_type=jnp.float32) + b2_ref[...]
    y = jnp.maximum(y, 0.0)
    c2p = y.shape[-1]
    # _pool_features with pool_mod='max' over K
    o_ref[...] = jnp.max(y.reshape(tm, kk, c2p), axis=1)


def sa_mlp_pool(grouped, add_term, w1, b1, w2, b2, *, tm_target=256):
    """grouped: (B, M, K, C1) f32, add_term: (B, M, C1) f32 -> (B, M, C2) f32."""
    B, M, K, C1 = grouped.shape
    H = w1.shape[1]
    C2 = w2.shape[1]

    # --- pad K to a sublane multiple (duplicate neighbour 0; max-pool invariant) ---
    K_pad = _round_up(K, 8)
    if K_pad != K:
        dup = jnp.broadcast_to(grouped[:, :, :1, :], (B, M, K_pad - K, C1))
        grouped = jnp.concatenate([grouped, dup], axis=2)

    # --- choose an M tile and pad M to a multiple of it -------------------------
    tm = min(tm_target, _round_up(M, 8))
    M_pad = _round_up(M, tm)
    if M_pad != M:
        grouped = jnp.pad(grouped, ((0, 0), (0, M_pad - M), (0, 0), (0, 0)))
        add_term = jnp.pad(add_term, ((0, 0), (0, M_pad - M), (0, 0)))

    # --- pad channel dims to full 128-lane vregs --------------------------------
    C1p, Hp, C2p = _round_up(C1, 128), _round_up(H, 128), _round_up(C2, 128)
    w1p = jnp.pad(w1, ((0, C1p - C1), (0, Hp - H))).astype(jnp.bfloat16)
    w2p = jnp.pad(w2, ((0, Hp - H), (0, C2p - C2))).astype(jnp.bfloat16)
    b2p = jnp.pad(b2.reshape(1, C2), ((0, 0), (0, C2p - C2))).astype(jnp.float32)

    # fold prompt-add + layer-1 bias into a per-output-point row bias (tiny, f32):
    #   ReLU(W1 (x + a) + b1) == ReLU(W1 x + (W1 a + b1))
    rb = add_term @ w1 + b1.reshape(1, 1, H)                               # (B, M_pad, H)
    rb = jnp.pad(rb, ((0, 0), (0, 0), (0, Hp - H))).astype(jnp.float32)
    rb = rb.reshape(B * M_pad, Hp)

    # bf16 grouped features, flattened over (B, M, K) in the wrapper (layout plumbing).
    # TODO(synk): fuse the ball-query gather into this kernel (scalar-prefetched idx +
    # per-row DMA) so the (B, M, K, C1) tensor is never materialized in HBM.
    xr = jnp.pad(grouped, ((0, 0), (0, 0), (0, 0), (0, C1p - C1))).astype(jnp.bfloat16)
    xr = xr.reshape(B * M_pad * K_pad, C1p)

    R = B * M_pad                       # B collapsed into the matmul row dimension
    grid = (R // tm,)

    flops = 2 * R * K_pad * (C1p * Hp + Hp * C2p)
    bytes_accessed = (xr.size * 2 + rb.size * 4 + w1p.size * 2 + w2p.size * 2
                      + b2p.size * 4 + R * C2p * 4)
    block_bytes = tm * K_pad * C1p * 2 + tm * Hp * 4 + tm * C2p * 4
    weight_bytes = (C1p * Hp + Hp * C2p) * 2 + C2p * 4
    # Budget: double-buffered blocks + weights + slack; clamp to [32 MiB, 64 MiB].
    # (On v7x keep tm such that this stays well inside the 64 MiB physical VMEM.)
    vmem_limit = int(min(max(4 * block_bytes + 2 * weight_bytes + (8 << 20),
                             32 << 20), 64 << 20))

    kernel = functools.partial(_sa_mlp_pool_kernel, tm=tm, kk=K_pad)
    out = pl.pallas_call(
        kernel,
        out_shape=jax.ShapeDtypeStruct((R, C2p), jnp.float32),
        grid_spec=pltpu.PrefetchScalarGridSpec(
            num_scalar_prefetch=0,
            grid=grid,
            in_specs=[
                pl.BlockSpec((tm * K_pad, C1p), lambda r: (r, 0)),
                pl.BlockSpec((tm, Hp), lambda r: (r, 0)),
                pl.BlockSpec((C1p, Hp), lambda r: (0, 0)),
                pl.BlockSpec((Hp, C2p), lambda r: (0, 0)),
                pl.BlockSpec((1, C2p), lambda r: (0, 0)),
            ],
            out_specs=pl.BlockSpec((tm, C2p), lambda r: (r, 0)),
        ),
        compiler_params=pltpu.CompilerParams(
            dimension_semantics=("parallel",),
            vmem_limit_bytes=vmem_limit,
        ),
        cost_estimate=pl.CostEstimate(
            flops=flops, transcendentals=0, bytes_accessed=bytes_accessed),
    )(xr, rb, w1p, w2p, b2p)

    return out.reshape(B, M_pad, C2p)[:, :M, :C2]


# -----------------------------------------------------------------------------
# Plain-JAX glue: D-FPS sampling, ball query, grouping, prompt projections
# -----------------------------------------------------------------------------
def furthest_point_sample(xyz, npoint):
    """D-FPS: xyz (B, N, 3) -> (B, npoint) int32 indices (starts at index 0)."""
    B, N, _ = xyz.shape

    def step(i, state):
        dist, farthest, idxs = state
        idxs = idxs.at[:, i].set(farthest)
        centroid = jnp.take_along_axis(xyz, farthest[:, None, None], axis=1)  # (B,1,3)
        d = jnp.sum((xyz - centroid) ** 2, axis=-1)                            # (B,N)
        dist = jnp.minimum(dist, d)
        farthest = jnp.argmax(dist, axis=-1).astype(jnp.int32)
        return dist, farthest, idxs

    dist0 = jnp.full((B, N), 1e10, jnp.float32)
    far0 = jnp.zeros((B,), jnp.int32)
    idxs0 = jnp.zeros((B, npoint), jnp.int32)
    _, _, idxs = jax.lax.fori_loop(0, npoint, step, (dist0, far0, idxs0))
    return idxs


def ball_query(radius, nsample, xyz, new_xyz):
    """For each new_xyz, first `nsample` points within radius (pad w/ first hit).

    xyz: (B, N, 3), new_xyz: (B, M, 3) -> (B, M, nsample) int32.
    Note: a query with zero in-radius points degrades to index 0 (same spirit as
    the CUDA ball_query); with FPS centers the center itself is always in radius.
    TODO(synk): rework for large N (avoid the (B,M,K,N) boolean intermediate).
    """
    diff = new_xyz[:, :, None, :] - xyz[:, None, :, :]          # (B, M, N, 3)
    d2 = jnp.sum(diff * diff, axis=-1)                          # (B, M, N)
    valid = d2 < (radius * radius)                              # strict <, min_radius = 0
    rank = jnp.cumsum(valid.astype(jnp.int32), axis=-1) - 1     # rank among valid
    slots = jnp.arange(nsample)                                 # (K,)
    match = valid[:, :, None, :] & (rank[:, :, None, :] == slots[None, None, :, None])
    has = jnp.any(match, axis=-1)                               # (B, M, K)
    idx_j = jnp.argmax(match, axis=-1)                          # (B, M, K)
    first_valid = jnp.argmax(valid, axis=-1)                    # (B, M), 0 if none
    idx = jnp.where(has, idx_j, first_valid[:, :, None])
    return idx.astype(jnp.int32)


def _gather_points(arr, idx):
    """arr: (B, N, D), idx: (B, M, K) -> (B, M, K, D)."""
    return jax.vmap(lambda a, i: a[i])(arr, idx)


def _prompt_add_term(grouped, params):
    """grouped: (B, M, K, C1) -> additive prompt term (B, M, C1)."""
    # emb = x.mean(dim=(-2,-1)) in NCHW == mean over (M, K) here
    emb = grouped.mean(axis=(1, 2))                                        # (B, C1)
    logits = emb @ params["pw_w"] + params["pw_b"]                         # (B, M)
    w = jax.nn.softmax(logits, axis=1)                                     # softmax over num_point
    pe = params["prompt_emb"][0]                                           # (M, 2)
    proj = pe @ params["pp_w"] + params["pp_b"]                            # (M, C1)
    mu = proj.mean(axis=-1, keepdims=True)
    var = proj.var(axis=-1, keepdims=True)
    proj = (proj - mu) / jnp.sqrt(var + 1e-5) * params["ln_g"] + params["ln_b"]
    proj = jax.nn.gelu(proj, approximate=False)                            # nn.GELU (exact)
    return proj[None, :, :] * w[:, :, None]                                # (B, M, C1)


def base_point_sa_forward(points_xyz, features, params, *, num_point, radius,
                          sample_num, use_xyz=True):
    """Mirrors BasePointSAModule.forward (single scale, D-FPS, max pool).

    points_xyz: (B, N, 3), features: (B, C, N)
    Returns: new_xyz (B, M, 3), new_features (B, C_out, M), indices (B, M)
    """
    # _sample_points (D-FPS)
    indices = furthest_point_sample(points_xyz, num_point)                     # (B, M)
    new_xyz = jnp.take_along_axis(points_xyz, indices[:, :, None], axis=1)     # (B, M, 3)

    # QueryAndGroup: ball query + gather + relative xyz + concat features
    idx = ball_query(radius, sample_num, points_xyz, new_xyz)                  # (B, M, K)
    grouped_xyz = _gather_points(points_xyz, idx) - new_xyz[:, :, None, :]     # (B, M, K, 3)
    feats_nl = jnp.transpose(features, (0, 2, 1))                              # (B, N, C)
    grouped_feats = _gather_points(feats_nl, idx)                              # (B, M, K, C)
    if use_xyz:
        grouped = jnp.concatenate([grouped_xyz, grouped_feats], axis=-1)       # (B, M, K, 3+C)
    else:
        grouped = grouped_feats

    # incorporate_prompt (small projections in JAX; the add itself is folded into
    # the kernel's per-point row bias)
    add_term = _prompt_add_term(grouped, params)                               # (B, M, C1)

    # fused MLP + max-pool hot path (Pallas)
    pooled = sa_mlp_pool(grouped, add_term,
                         params["w1"], params["b1"], params["w2"], params["b2"])  # (B, M, C2)

    new_features = jnp.transpose(pooled, (0, 2, 1))                            # (B, C2, M) like PyTorch
    return new_xyz, new_features, indices


# pure-JAX f32 reference of the fused kernel, for a correctness check
def _ref_mlp_pool(x, add, w1, b1, w2, b2):
    x = x + add[:, :, None, :]
    h = jnp.maximum(jnp.einsum("bmkc,ch->bmkh", x, w1) + b1[0], 0.0)
    y = jnp.maximum(jnp.einsum("bmkh,hc->bmkc", h, w2) + b2[0], 0.0)
    return jnp.max(y, axis=2)


if __name__ == "__main__":
    # Small, module-consistent shapes:
    #   B=2 clouds, N=64 points, C=13 per-point features, num_point M=16,
    #   sample_num K=8, mlp_channels = [[13, 32, 32]] (use_xyz -> C1 = 16)
    B, N, C = 2, 64, 13
    M, K = 16, 8
    C1 = C + 3          # mlp_channels[0][0] + 3
    H, C2 = 32, 32
    radius = 0.5

    key = jax.random.PRNGKey(0)
    ks = jax.random.split(key, 10)

    points_xyz = jax.random.uniform(ks[0], (B, N, 3), jnp.float32)
    features = 0.1 * jax.random.normal(ks[1], (B, C, N), jnp.float32)

    def rnd(k, shape, s=0.1):
        return s * jax.random.normal(k, shape, jnp.float32)

    params = {
        # nn.Parameter(torch.zeros(1, num_point, 2)) -- random here for a non-trivial test
        "prompt_emb": rnd(ks[2], (1, M, 2)),
        "pp_w": rnd(ks[3], (2, C1)),          # prompt_proj Linear(2 -> C1)
        "pp_b": rnd(ks[4], (C1,)),
        "ln_g": jnp.ones((C1,), jnp.float32),  # LayerNorm(C1)
        "ln_b": jnp.zeros((C1,), jnp.float32),
        "pw_w": rnd(ks[5], (C1, M)),          # prompt_weights Linear(C1 -> num_point)
        "pw_b": rnd(ks[6], (M,)),
        "w1": rnd(ks[7], (C1, H)),            # mlp layer 1 (1x1 conv)
        "b1": rnd(ks[8], (1, H)),
        "w2": rnd(ks[9], (H, C2)),            # mlp layer 2 (1x1 conv)
        "b2": jnp.zeros((1, C2), jnp.float32),
    }

    fwd = jax.jit(functools.partial(base_point_sa_forward,
                                    num_point=M, radius=radius, sample_num=K))
    new_xyz, new_features, indices = fwd(points_xyz, features, params)
    jax.block_until_ready((new_xyz, new_features, indices))

    assert new_xyz.shape == (B, M, 3)
    assert new_features.shape == (B, C2, M)
    assert indices.shape == (B, M)

    # sanity-check the Pallas hot path against a pure-JAX f32 reference
    idx = ball_query(radius, K, points_xyz, new_xyz)
    grouped_xyz = _gather_points(points_xyz, idx) - new_xyz[:, :, None, :]
    grouped = jnp.concatenate(
        [grouped_xyz, _gather_points(jnp.transpose(features, (0, 2, 1)), idx)], axis=-1)
    add_term = _prompt_add_term(grouped, params)
    ref = _ref_mlp_pool(grouped, add_term, params["w1"], params["b1"],
                        params["w2"], params["b2"])
    got = sa_mlp_pool(grouped, add_term, params["w1"], params["b1"],
                      params["w2"], params["b2"])
    jax.block_until_ready(got)
    assert got.shape == ref.shape
    # bf16 MXU operands -> loosened tolerance vs the f32 reference
    assert jnp.allclose(got, ref, rtol=3e-2, atol=3e-2), "Pallas kernel mismatch vs reference"

    print("KERNEL_OK")
</pallas_src>

<mosaic_0001>
module attributes {stable_mosaic.version = 11 : i64} {
  func.func @_sa_mlp_pool_kernel(%arg0: i32, %arg1: memref<128x128xbf16, #tpu.memory_space<vmem>>, %arg2: memref<16x128xf32, #tpu.memory_space<vmem>>, %arg3: memref<128x128xbf16, #tpu.memory_space<vmem>>, %arg4: memref<128x128xbf16, #tpu.memory_space<vmem>>, %arg5: memref<1x128xf32, #tpu.memory_space<vmem>>, %arg6: memref<16x128xf32, #tpu.memory_space<vmem>>) attributes {dimension_semantics = [#tpu.dimension_semantics<parallel>], iteration_bounds = array<i64: 2>, scalar_prefetch = 0 : i64, scratch_operands = 0 : i64, tpu.core_type = #tpu.core_type<tc>, window_params = [{transform_indices = @transform_0, window_bounds = array<i64: 128, 128>}, {transform_indices = @transform_1, window_bounds = array<i64: 16, 128>}, {pipeline_mode = #tpu.pipeline_mode<synchronous>, transform_indices = @transform_2, window_bounds = array<i64: 128, 128>}, {pipeline_mode = #tpu.pipeline_mode<synchronous>, transform_indices = @transform_3, window_bounds = array<i64: 128, 128>}, {pipeline_mode = #tpu.pipeline_mode<synchronous>, transform_indices = @transform_4, window_bounds = array<i64: 1, 128>}, {transform_indices = @transform_5, window_bounds = array<i64: 16, 128>}]} {
    %c0 = arith.constant 0 : index
    %c0_0 = arith.constant 0 : index
    %0 = vector.load %arg1[%c0, %c0_0] : memref<128x128xbf16, #tpu.memory_space<vmem>>, vector<128x128xbf16>
    %c0_1 = arith.constant 0 : index
    %c0_2 = arith.constant 0 : index
    %1 = vector.load %arg3[%c0_1, %c0_2] : memref<128x128xbf16, #tpu.memory_space<vmem>>, vector<128x128xbf16>
    %cst = arith.constant dense<0.000000e+00> : vector<128x128xf32>
    %2 = tpu.matmul %0, %1, %cst {dimension_numbers = #tpu.dot_dimension_numbers<[1], [0], [0], [1], [0, 0, 1, 1], [], []>} : vector<128x128xbf16>, vector<128x128xbf16>, vector<128x128xf32> -> vector<128x128xf32>
    %3 = vector.shape_cast %2 : vector<128x128xf32> to vector<16x8x128xf32>
    %c0_3 = arith.constant 0 : index
    %c0_4 = arith.constant 0 : index
    %4 = vector.load %arg2[%c0_3, %c0_4] : memref<16x128xf32, #tpu.memory_space<vmem>>, vector<16x128xf32>
    %5 = vector.shape_cast %4 : vector<16x128xf32> to vector<16x1x128xf32>
    %6 = vector.broadcast %5 : vector<16x1x128xf32> to vector<16x8x128xf32>
    %7 = arith.addf %3, %6 : vector<16x8x128xf32>
    %cst_5 = arith.constant 0.000000e+00 : f32
    %8 = vector.broadcast %cst_5 : f32 to vector<16x8x128xf32>
    %9 = arith.maximumf %7, %8 : vector<16x8x128xf32>
    %10 = vector.shape_cast %9 : vector<16x8x128xf32> to vector<128x128xf32>
    %11 = arith.truncf %10 : vector<128x128xf32> to vector<128x128xbf16>
    %c0_6 = arith.constant 0 : index
    %c0_7 = arith.constant 0 : index
    %12 = vector.load %arg4[%c0_6, %c0_7] : memref<128x128xbf16, #tpu.memory_space<vmem>>, vector<128x128xbf16>
    %cst_8 = arith.constant dense<0.000000e+00> : vector<128x128xf32>
    %13 = tpu.matmul %11, %12, %cst_8 {dimension_numbers = #tpu.dot_dimension_numbers<[1], [0], [0], [1], [0, 0, 1, 1], [], []>} : vector<128x128xbf16>, vector<128x128xbf16>, vector<128x128xf32> -> vector<128x128xf32>
    %c0_9 = arith.constant 0 : index
    %c0_10 = arith.constant 0 : index
    %14 = vector.load %arg5[%c0_9, %c0_10] : memref<1x128xf32, #tpu.memory_space<vmem>>, vector<1x128xf32>
    %15 = vector.broadcast %14 : vector<1x128xf32> to vector<128x128xf32>
    %16 = arith.addf %13, %15 : vector<128x128xf32>
    %cst_11 = arith.constant 0.000000e+00 : f32
    %17 = vector.broadcast %cst_11 : f32 to vector<128x128xf32>
    %18 = arith.maximumf %16, %17 : vector<128x128xf32>
    %19 = vector.shape_cast %18 : vector<128x128xf32> to vector<16x8x128xf32>
    %cst_12 = arith.constant dense<0xFF800000> : vector<16x128xf32>
    %20 = vector.multi_reduction <maximumf>, %19, %cst_12 [1] : vector<16x8x128xf32> to vector<16x128xf32>
    %c0_13 = arith.constant 0 : index
    %c0_14 = arith.constant 0 : index
    %21 = vector.load %arg6[%c0_13, %c0_14] : memref<16x128xf32, #tpu.memory_space<vmem>>, vector<16x128xf32>
    tpu.vector_store %arg6[%c0_13, %c0_14], %20 {strides = array<i32>} : memref<16x128xf32, #tpu.memory_space<vmem>>, vector<16x128xf32>,
    return
  }
  func.func @transform_0(%arg0: i32) -> (i32, i32) {
    %c0_i32 = arith.constant 0 : i32
    %c0_i32_0 = arith.constant 0 : i32
    return %arg0, %c0_i32 : i32, i32
  }
  func.func @transform_1(%arg0: i32) -> (i32, i32) {
    %c0_i32 = arith.constant 0 : i32
    %c0_i32_0 = arith.constant 0 : i32
    return %arg0, %c0_i32 : i32, i32
  }
  func.func @transform_2(%arg0: i32) -> (i32, i32) {
    %c0_i32 = arith.constant 0 : i32
    %c0_i32_0 = arith.constant 0 : i32
    %c0_i32_1 = arith.constant 0 : i32
    return %c0_i32, %c0_i32_0 : i32, i32
  }
  func.func @transform_3(%arg0: i32) -> (i32, i32) {
    %c0_i32 = arith.constant 0 : i32
    %c0_i32_0 = arith.constant 0 : i32
    %c0_i32_1 = arith.constant 0 : i32
    return %c0_i32, %c0_i32_0 : i32, i32
  }
  func.func @transform_4(%arg0: i32) -> (i32, i32) {
    %c0_i32 = arith.constant 0 : i32
    %c0_i32_0 = arith.constant 0 : i32
    %c0_i32_1 = arith.constant 0 : i32
    return %c0_i32, %c0_i32_0 : i32, i32
  }
  func.func @transform_5(%arg0: i32) -> (i32, i32) {
    %c0_i32 = arith.constant 0 : i32
    %c0_i32_0 = arith.constant 0 : i32
    return %arg0, %c0_i32 : i32, i32
  }
}

</mosaic_0001>

<llo_original>
// kernel: custom-call.8
$region0: #{custom-call.8}
  %s0 = inlined_call_operand.vmem [shape: f32[2,64], index: 0, kind: output, shape index: {}]

// kernel: base_point_sa_forward.1
$region0: #{base_point_sa_forward.1}
  #allocation0 [shape = 'u32[]', space=smem, size = 0x4, offset = 0x4, fixed_abs, tag = 'smem constant byte address 0x4 - core index']
  #allocation1 [shape = 'u32[144,128]{1,0:T(1,128)}', space=vmem, size = 0x12000, scoped, tag = 'internal scratch']
  %s0 = inlined_call_operand.vmem [shape: bf16[256,128], index: 0, kind: input, shape index: {}]
  %s1 = inlined_call_operand.vmem [shape: f32[32,128], index: 1, kind: input, shape index: {}]
  %s2 = inlined_call_operand.vmem [shape: bf16[128,128], index: 2, kind: input, shape index: {}]
  %s3 = inlined_call_operand.vmem [shape: bf16[128,128], index: 3, kind: input, shape index: {}]
  %s4 = inlined_call_operand.vmem [shape: f32[1,128], index: 4, kind: input, shape index: {}]
  %s5 = inlined_call_operand.vmem [shape: f32[32,128], index: 5, kind: output, shape index: {}]
  %s6 = sld [smem:[#allocation0]]
  $region53: #{base_point_sa_forward.1} parent=0
    _
  %s8 = ssub.s32 1, %s6
  %s9 = scalar_select 0, %s8, %s6
  loop: start=0, step=1, limit=4
  $region2: #{base_point_sa_forward.1} parent=0 // loop_pre_header
    _
  $region3: #{base_point_sa_forward.1} parent=0 // loop_header
    %s11 = sphi 0, %s15
    %p12 = scmp.ge.s32.totalorder %s11, 4
    %s21 = sphi 0, %s23
    %s24 = sphi 0, %s21
    %s25 = sphi 0, %s24
    %s41 = sphi 0, %s25
    %s47 = sphi 0, %s49
    %s50 = sphi 0, %s47
    %s51 = sphi 0, %s50
    %s67 = sphi 0, %s51
    %s71 = sphi 0, %s71
    %s73 = sphi 0, %s71
    %s74 = sphi 0, %s73
    %s88 = sphi 0, %s74
    %s92 = sphi 0, %s92
    %s94 = sphi 0, %s92
    %s95 = sphi 0, %s94
    %s109 = sphi 0, %s95
    %s113 = sphi 0, %s113
    %s115 = sphi 0, %s113
    %s116 = sphi 0, %s115
    %s130 = sphi 0, %s116
    %s136 = sphi 0, %s138
    %s139 = sphi 0, %s136
    %s140 = sphi 0, %s139
    %s156 = sphi 0, %s140
  $region4: #{base_point_sa_forward.1} parent=0 // loop_header_branch
    %14 = sbr.rel (%p12) target = $region8
  $region5: #{base_point_sa_forward.1} parent=0 // loop_body
    %s16 = ssub.s32 %s11, 1
    %s17 = ssub.s32 %s11, 2
    %s18 = sadd.s32 %s11, 1
    %s19 = ssub.s32 %s11, %s18
    %p20 = scmp.eq.s32.totalorder %s19, 0
    %s22 = sadd.s32 %s21, 1
    %s23 = scalar_select %p20, %s21, %s22
    %p26 = pneg %p20
    %p27 = scmp.eq.s32.totalorder %s11, 1
    %p28 = por %p26, %p27
    %p29 = scmp.ne.s32.totalorder %s21, %s24
    %p30 = scmp.eq.s32.totalorder %s11, 0
    %p31 = por %p29, %p30
    %p32 = scmp.ne.s32.totalorder %s21, %s24
    %p33 = scmp.eq.s32.totalorder %s16, 1
    %p34 = por %p32, %p33
    %p35 = scmp.ne.s32.totalorder %s24, %s25
    %p36 = scmp.eq.s32.totalorder %s16, 0
    %p37 = por %p35, %p36
    %p38 = scmp.ne.s32.totalorder %s24, %s25
    %p39 = scmp.eq.s32.totalorder %s17, 1
    %p40 = por %p38, %p39
    %p42 = scmp.ne.s32.totalorder %s25, %s41
    %p43 = scmp.eq.s32.totalorder %s17, 0
    %p44 = por %p42, %p43
    %s45 = ssub.s32 %s11, %s18
    %p46 = scmp.eq.s32.totalorder %s45, 0
    %s48 = sadd.s32 %s47, 1
    %s49 = scalar_select %p46, %s47, %s48
    %p52 = pneg %p46
    %p53 = scmp.eq.s32.totalorder %s11, 1
    %p54 = por %p52, %p53
    %p55 = scmp.ne.s32.totalorder %s47, %s50
    %p56 = scmp.eq.s32.totalorder %s11, 0
    %p57 = por %p55, %p56
    %p58 = scmp.ne.s32.totalorder %s47, %s50
    %p59 = scmp.eq.s32.totalorder %s16, 1
    %p60 = por %p58, %p59
    %p61 = scmp.ne.s32.totalorder %s50, %s51
    %p62 = scmp.eq.s32.totalorder %s16, 0
    %p63 = por %p61, %p62
    %p64 = scmp.ne.s32.totalorder %s50, %s51
    %p65 = scmp.eq.s32.totalorder %s17, 1
    %p66 = por %p64, %p65
    %p68 = scmp.ne.s32.totalorder %s51, %s67
    %p69 = scmp.eq.s32.totalorder %s17, 0
    %p70 = por %p68, %p69
    %s72 = sadd.s32 %s71, 1
    %p75 = scmp.eq.s32.totalorder %s11, 1
    %p76 = scmp.ne.s32.totalorder %s71, %s73
    %p77 = scmp.eq.s32.totalorder %s11, 0
    %p78 = por %p76, %p77
    %p79 = scmp.ne.s32.totalorder %s71, %s73
    %p80 = scmp.eq.s32.totalorder %s16, 1
    %p81 = por %p79, %p80
    %p82 = scmp.ne.s32.totalorder %s73, %s74
    %p83 = scmp.eq.s32.totalorder %s16, 0
    %p84 = por %p82, %p83
    %p85 = scmp.ne.s32.totalorder %s73, %s74
    %p86 = scmp.eq.s32.totalorder %s17, 1
    %p87 = por %p85, %p86
    %p89 = scmp.ne.s32.totalorder %s74, %s88
    %p90 = scmp.eq.s32.totalorder %s17, 0
    %p91 = por %p89, %p90
    %s93 = sadd.s32 %s92, 1
    %p96 = scmp.eq.s32.totalorder %s11, 1
    %p97 = scmp.ne.s32.totalorder %s92, %s94
    %p98 = scmp.eq.s32.totalorder %s11, 0
    %p99 = por %p97, %p98
    %p100 = scmp.ne.s32.totalorder %s92, %s94
    %p101 = scmp.eq.s32.totalorder %s16, 1
    %p102 = por %p100, %p101
    %p103 = scmp.ne.s32.totalorder %s94, %s95
    %p104 = scmp.eq.s32.totalorder %s16, 0
    %p105 = por %p103, %p104
    %p106 = scmp.ne.s32.totalorder %s94, %s95
    %p107 = scmp.eq.s32.totalorder %s17, 1
    %p108 = por %p106, %p107
    %p110 = scmp.ne.s32.totalorder %s95, %s109
    %p111 = scmp.eq.s32.totalorder %s17, 0
    %p112 = por %p110, %p111
    %s114 = sadd.s32 %s113, 1
    %p117 = scmp.eq.s32.totalorder %s11, 1
    %p118 = scmp.ne.s32.totalorder %s113, %s115
    %p119 = scmp.eq.s32.totalorder %s11, 0
    %p120 = por %p118, %p119
    %p121 = scmp.ne.s32.totalorder %s113, %s115
    %p122 = scmp.eq.s32.totalorder %s16, 1
    %p123 = por %p121, %p122
    %p124 = scmp.ne.s32.totalorder %s115, %s116
    %p125 = scmp.eq.s32.totalorder %s16, 0
    %p126 = por %p124, %p125
    %p127 = scmp.ne.s32.totalorder %s115, %s116
    %p128 = scmp.eq.s32.totalorder %s17, 1
    %p129 = por %p127, %p128
    %p131 = scmp.ne.s32.totalorder %s116, %s130
    %p132 = scmp.eq.s32.totalorder %s17, 0
    %p133 = por %p131, %p132
    %s134 = ssub.s32 %s11, %s18
    %p135 = scmp.eq.s32.totalorder %s134, 0
    %s137 = sadd.s32 %s136, 1
    %s138 = scalar_select %p135, %s136, %s137
    %p141 = pneg %p135
    %p142 = scmp.eq.s32.totalorder %s11, 1
    %p143 = por %p141, %p142
    %p144 = scmp.ne.s32.totalorder %s136, %s139
    %p145 = scmp.eq.s32.totalorder %s11, 0
    %p146 = por %p144, %p145
    %p147 = scmp.ne.s32.totalorder %s136, %s139
    %p148 = scmp.eq.s32.totalorder %s16, 1
    %p149 = por %p147, %p148
    %p150 = scmp.ne.s32.totalorder %s139, %s140
    %p151 = scmp.eq.s32.totalorder %s16, 0
    %p152 = por %p150, %p151
    %p153 = scmp.ne.s32.totalorder %s139, %s140
    %p154 = scmp.eq.s32.totalorder %s17, 1
    %p155 = por %p153, %p154
    %p157 = scmp.ne.s32.totalorder %s140, %s156
    %p158 = scmp.eq.s32.totalorder %s17, 0
    %p159 = por %p157, %p158
    %p160 = scmp.le.s32.totalorder 1, %s11
    %p161 = scmp.lt.s32.totalorder %s11, 3
    %p162 = pnand %p160, %p161
    %p163 = pneg %p162
    // Predicated region
    $region9: #{base_point_sa_forward.1} parent=5 // pred_check
      _
    $region10: #{base_point_sa_forward.1} parent=5 // pred_check_branch
      %165 = sbr.rel (%p162) target = $region12
    $region11: #{base_point_sa_forward.1} parent=5 // pred_region
      %s166 = ssub.s32 %s11, 1
      // Predicated region
      $region13: #{base_point_sa_forward.1} parent=11 // pred_check
        %p167 = pneg %p84
      $region14: #{base_point_sa_forward.1} parent=11 // pred_check_branch
        %169 = sbr.rel (%p167) target = $region16
      $region15: #{base_point_sa_forward.1} parent=11 // pred_region
        _
      $region16: #{base_point_sa_forward.1} parent=11 // pred_fallthru
        _
      // Predicated region
      $region17: #{base_point_sa_forward.1} parent=11 // pred_check
        %p170 = pneg %p105
      $region18: #{base_point_sa_forward.1} parent=11 // pred_check_branch
        %172 = sbr.rel (%p170) target = $region20
      $region19: #{base_point_sa_forward.1} parent=11 // pred_region
        _
      $region20: #{base_point_sa_forward.1} parent=11 // pred_fallthru
        _
      // Predicated region
      $region21: #{base_point_sa_forward.1} parent=11 // pred_check
        %p173 = pneg %p126
      $region22: #{base_point_sa_forward.1} parent=11 // pred_check_branch
        %175 = sbr.rel (%p173) target = $region24
      $region23: #{base_point_sa_forward.1} parent=11 // pred_region
        _
      $region24: #{base_point_sa_forward.1} parent=11 // pred_fallthru
        _
    $region12: #{base_point_sa_forward.1} parent=5 // pred_fallthru
      _
    %p176 = scmp.lt.s32.totalorder %s11, 2
    // Predicated region
    $region25: #{base_point_sa_forward.1} parent=5 // pred_check
      %p177 = pneg %p176
    $region26: #{base_point_sa_forward.1} parent=5 // pred_check_branch
      %179 = sbr.rel (%p177) target = $region28
    $region27: #{base_point_sa_forward.1} parent=5 // pred_region
      // Predicated region
      $region29: #{base_point_sa_forward.1} parent=27 // pred_check
        %p180 = pneg %p31
      $region30: #{base_point_sa_forward.1} parent=27 // pred_check_branch
        %182 = sbr.rel (%p180) target = $region32
      $region31: #{base_point_sa_forward.1} parent=27 // pred_region
        %s183 = smul.u32 16, %s11
        %p184 = scmp.lt.s32.totalorder %s183, 31
        %s185 = scalar_select %p184, %s183, 31
        %s186 = smul.addr %s185, 4
        %s187 = scalar_lea.vmem %s0, %s186
        %s188 = smul.u32 16, %s11
      $region32: #{base_point_sa_forward.1} parent=27 // pred_fallthru
        _
      // Predicated region
      $region33: #{base_point_sa_forward.1} parent=27 // pred_check
        %p189 = pneg %p57
      $region34: #{base_point_sa_forward.1} parent=27 // pred_check_branch
        %191 = sbr.rel (%p189) target = $region36
      $region35: #{base_point_sa_forward.1} parent=27 // pred_region
        %s192 = smul.u32 2, %s11
        %p193 = scmp.lt.s32.totalorder %s192, 3
        %s194 = scalar_select %p193, %s192, 3
        %s195 = smul.addr %s194, 8
        %s196 = scalar_lea.vmem %s1, %s195
        %s197 = smul.u32 2, %s11
      $region36: #{base_point_sa_forward.1} parent=27 // pred_fallthru
        _
    $region28: #{base_point_sa_forward.1} parent=5 // pred_fallthru
      _
    %p198 = scmp.le.s32.totalorder 1, %s11
    %p199 = scmp.lt.s32.totalorder %s11, 3
    %p200 = pnand %p198, %p199
    %p201 = pneg %p200
    // Predicated region
    $region37: #{base_point_sa_forward.1} parent=5 // pred_check
      _
    $region38: #{base_point_sa_forward.1} parent=5 // pred_check_branch
      %203 = sbr.rel (%p200) target = $region40
    $region39: #{base_point_sa_forward.1} parent=5 // pred_region
      %s204 = ssub.s32 %s11, 1
      %s205 = smul.u32 16, %s16
      %p206 = scmp.lt.s32.totalorder %s205, 31
      %s207 = scalar_select %p206, %s205, 31
      %s208 = smul.addr %s207, 4
      %s209 = scalar_lea.vmem %s0, %s208
      %p210 = pneg %p37
      %p211 = pneg %p34
      %s212 = smul.u32 2, %s16
      %p213 = scmp.lt.s32.totalorder %s212, 3
      %s214 = scalar_select %p213, %s212, 3
      %s215 = smul.addr %s214, 8
      %s216 = scalar_lea.vmem %s1, %s215
      %p217 = pneg %p63
      %p218 = pneg %p60
      %p219 = pneg %p84
      %p220 = pneg %p81
      %p221 = pneg %p105
      %p222 = pneg %p102
      %p223 = pneg %p126
      %p224 = pneg %p123
      %p225 = pneg %p152
      %p226 = pneg %p149
      %s227 = smul.u32 2, %s16
      %p228 = scmp.lt.s32.totalorder %s227, 3
      %s229 = scalar_select %p228, %s227, 3
      %s230 = smul.addr %s229, 8
      %s231 = scalar_lea.vmem %s5, %s230
      %s232 = smul.u32 16, %s16
      %p233 = scmp.lt.s32.totalorder %s232, 31
      %s234 = scalar_select %p233, %s232, 31
      %s235 = smul.addr %s234, 4
      %s236 = scalar_lea.vmem %s0, %s235
      %s237 = smul.u32 16, %s16
      %s238 = smul.u32 2, %s16
      %p239 = scmp.lt.s32.totalorder %s238, 3
      %s240 = scalar_select %p239, %s238, 3
      %s241 = smul.addr %s240, 8
      %s242 = scalar_lea.vmem %s1, %s241
      %s243 = smul.u32 2, %s16
      %s244 = smul.u32 2, %s16
      %p245 = scmp.lt.s32.totalorder %s244, 3
      %s246 = scalar_select %p245, %s244, 3
      %s247 = smul.addr %s246, 8
      %s248 = scalar_lea.vmem %s5, %s247
      %s249 = smul.u32 2, %s16
      %v251 = vld [vmem:[%s236] sm:$0xf]
      %v252 = vld [vmem:[%s236 + $0x4] sm:$0xf]
      %v253 = vld [vmem:[%s236 + $0x8] sm:$0xf]
      %v254 = vld [vmem:[%s236 + $0xc] sm:$0xf]
      %v255 = vld [vmem:[%s236 + $0x10] sm:$0xf]
      %v256 = vld [vmem:[%s236 + $0x14] sm:$0xf]
      %v257 = vld [vmem:[%s236 + $0x18] sm:$0xf]
      %v258 = vld [vmem:[%s236 + $0x1c] sm:$0xf]
      %v259 = vld [vmem:[%s236 + $0x20] sm:$0xf]
      %v260 = vld [vmem:[%s236 + $0x24] sm:$0xf]
      %v261 = vld [vmem:[%s236 + $0x28] sm:$0xf]
      %v262 = vld [vmem:[%s236 + $0x2c] sm:$0xf]
      %v263 = vld [vmem:[%s236 + $0x30] sm:$0xf]
      %v264 = vld [vmem:[%s236 + $0x34] sm:$0xf]
      %v265 = vld [vmem:[%s236 + $0x38] sm:$0xf]
      %v266 = vld [vmem:[%s236 + $0x3c] sm:$0xf]
      %v267 = vld [vmem:[%s2] sm:$0xf]
      %v268 = vld [vmem:[%s2 + $0x4] sm:$0xf]
      %v269 = vld [vmem:[%s2 + $0x8] sm:$0xf]
      %v270 = vld [vmem:[%s2 + $0xc] sm:$0xf]
      %v271 = vld [vmem:[%s2 + $0x10] sm:$0xf]
      %v272 = vld [vmem:[%s2 + $0x14] sm:$0xf]
      %v273 = vld [vmem:[%s2 + $0x18] sm:$0xf]
      %v274 = vld [vmem:[%s2 + $0x1c] sm:$0xf]
      %v275 = vld [vmem:[%s2 + $0x20] sm:$0xf]
      %v276 = vld [vmem:[%s2 + $0x24] sm:$0xf]
      %v277 = vld [vmem:[%s2 + $0x28] sm:$0xf]
      %v278 = vld [vmem:[%s2 + $0x2c] sm:$0xf]
      %v279 = vld [vmem:[%s2 + $0x30] sm:$0xf]
      %v280 = vld [vmem:[%s2 + $0x34] sm:$0xf]
      %v281 = vld [vmem:[%s2 + $0x38] sm:$0xf]
      %v282 = vld [vmem:[%s2 + $0x3c] sm:$0xf]
      %v299 = vunpack.c.l.b16 %v251
      %v300 = vunpack.c.l.b16 %v252
      %v301 = vunpack.c.l.b16 %v253
      %v302 = vunpack.c.l.b16 %v254
      %v303 = vunpack.c.l.b16 %v255
      %v304 = vunpack.c.l.b16 %v256
      %v305 = vunpack.c.l.b16 %v257
      %v306 = vunpack.c.l.b16 %v258
      %v307 = vunpack.c.l.b16 %v259
      %v308 = vunpack.c.l.b16 %v260
      %v309 = vunpack.c.l.b16 %v261
      %v310 = vunpack.c.l.b16 %v262
      %v311 = vunpack.c.l.b16 %v263
      %v312 = vunpack.c.l.b16 %v264
      %v313 = vunpack.c.l.b16 %v265
      %v314 = vunpack.c.l.b16 %v266
      %v315 = vpack.c.b16 %v300, %v299
      %v316 = vpack.c.b16 %v302, %v301
      %v317 = vpack.c.b16 %v304, %v303
      %v318 = vpack.c.b16 %v306, %v305
      %v319 = vpack.c.b16 %v308, %v307
      %v320 = vpack.c.b16 %v310, %v309
      %v321 = vpack.c.b16 %v312, %v311
      %v322 = vpack.c.b16 %v314, %v313
      %v347 = vunpack.c.l.b16 %v267
      %v348 = vunpack.c.l.b16 %v268
      %v349 = vunpack.c.l.b16 %v269
      %v350 = vunpack.c.l.b16 %v270
      %v351 = vunpack.c.l.b16 %v271
      %v352 = vunpack.c.l.b16 %v272
      %v353 = vunpack.c.l.b16 %v273
      %v354 = vunpack.c.l.b16 %v274
      %v355 = vunpack.c.l.b16 %v275
      %v356 = vunpack.c.l.b16 %v276
      %v357 = vunpack.c.l.b16 %v277
      %v358 = vunpack.c.l.b16 %v278
      %v359 = vunpack.c.l.b16 %v279
      %v360 = vunpack.c.l.b16 %v280
      %v361 = vunpack.c.l.b16 %v281
      %v362 = vunpack.c.l.b16 %v282
      %v363 = vpack.c.b16 %v348, %v347
      %v364 = vpack.c.b16 %v350, %v349
      %v365 = vpack.c.b16 %v352, %v351
      %v366 = vpack.c.b16 %v354, %v353
      %v367 = vpack.c.b16 %v356, %v355
      %v368 = vpack.c.b16 %v358, %v357
      %v369 = vpack.c.b16 %v360, %v359
      %v370 = vpack.c.b16 %v362, %v361
      %379 = vmatprep.subr.bf16.mxu0 0
      %380 = vmatpush1.bf16.msra.mxu0 %v363
      %381 = vmatprep.subr.bf16.mxu0 0
      %382 = vmatpush1.bf16.msra.mxu0 %v364
      %383 = vmatprep.subr.bf16.mxu0 0
      %384 = vmatpush1.bf16.msra.mxu0 %v365
      %385 = vmatprep.subr.bf16.mxu0 0
      %386 = vmatpush1.bf16.msra.mxu0 %v366
      %387 = vmatprep.subr.bf16.mxu0 0
      %388 = vmatpush1.bf16.msra.mxu0 %v367
      %389 = vmatprep.subr.bf16.mxu0 0
      %390 = vmatpush1.bf16.msra.mxu0 %v368
      %391 = vmatprep.subr.bf16.mxu0 0
      %392 = vmatpush1.bf16.msra.mxu0 %v369
      %393 = vmatprep.subr.bf16.mxu0 0
      %394 = vmatpush1.bf16.msra.mxu0 %v370
      %395 = vmatprep.subr.bf16.mxu0 0
      %396 = vmatpush1.bf16.msra.mxu0 0
      %397 = vmatprep.subr.bf16.mxu0 0
      %398 = vmatpush1.bf16.msra.mxu0 0
      %399 = vmatprep.subr.bf16.mxu0 0
      %400 = vmatpush1.bf16.msra.mxu0 0
      %401 = vmatprep.subr.bf16.mxu0 0
      %402 = vmatpush1.bf16.msra.mxu0 0
      %403 = vmatprep.subr.bf16.mxu0 0
      %404 = vmatpush1.bf16.msra.mxu0 0
      %405 = vmatprep.subr.bf16.mxu0 0
      %406 = vmatpush1.bf16.msra.mxu0 0
      %407 = vmatprep.subr.bf16.mxu0 0
      %408 = vmatpush1.bf16.msra.mxu0 0
      %409 = vmatprep.subr.bf16.mxu0 0
      %410 = vmatpush1.bf16.msra.mxu0 0
      %411 = vmatprep.mubr.bf16.mxu0 0
      %412 = vmatmul.mubr.bf16.gmra.mrb[0].mxu0 %v315
      %v413 = vpop.f32.mrb[0].mxu0
      %v414 = vadd.f32 0.0, %v413
      %v415 = vpop.f32.mrb[0].mxu0
      %v416 = vpop.f32.mrb[0].mxu0
      %v417 = vadd.f32 0.0, %v416
      %v418 = vpop.f32.mrb[0].mxu0
      %419 = vmatprep.mubr.bf16.mxu0 0
      %420 = vmatmul.mubr.bf16.gmra.mrb[0].mxu0 %v316
      %v421 = vpop.f32.mrb[0].mxu0
      %v422 = vadd.f32 0.0, %v421
      %v423 = vpop.f32.mrb[0].mxu0
      %v424 = vpop.f32.mrb[0].mxu0
      %v425 = vadd.f32 0.0, %v424
      %v426 = vpop.f32.mrb[0].mxu0
      %427 = vmatprep.mubr.bf16.mxu0 0
      %428 = vmatmul.mubr.bf16.gmra.mrb[0].mxu0 %v317
      %v429 = vpop.f32.mrb[0].mxu0
      %v430 = vadd.f32 0.0, %v429
      %v431 = vpop.f32.mrb[0].mxu0
      %v432 = vpop.f32.mrb[0].mxu0
      %v433 = vadd.f32 0.0, %v432
      %v434 = vpop.f32.mrb[0].mxu0
      %435 = vmatprep.mubr.bf16.mxu0 0
      %436 = vmatmul.mubr.bf16.gmra.mrb[0].mxu0 %v318
      %v437 = vpop.f32.mrb[0].mxu0
      %v438 = vadd.f32 0.0, %v437
      %v439 = vpop.f32.mrb[0].mxu0
      %v440 = vpop.f32.mrb[0].mxu0
      %v441 = vadd.f32 0.0, %v440
      %v442 = vpop.f32.mrb[0].mxu0
      %443 = vmatprep.mubr.bf16.mxu0 0
      %444 = vmatmul.mubr.bf16.gmra.mrb[0].mxu0 %v319
      %v445 = vpop.f32.mrb[0].mxu0
      %v446 = vadd.f32 0.0, %v445
      %v447 = vpop.f32.mrb[0].mxu0
      %v448 = vpop.f32.mrb[0].mxu0
      %v449 = vadd.f32 0.0, %v448
      %v450 = vpop.f32.mrb[0].mxu0
      %451 = vmatprep.mubr.bf16.mxu0 0
      %452 = vmatmul.mubr.bf16.gmra.mrb[0].mxu0 %v320
      %v453 = vpop.f32.mrb[0].mxu0
      %v454 = vadd.f32 0.0, %v453
      %v455 = vpop.f32.mrb[0].mxu0
      %v456 = vpop.f32.mrb[0].mxu0
      %v457 = vadd.f32 0.0, %v456
      %v458 = vpop.f32.mrb[0].mxu0
      %459 = vmatprep.mubr.bf16.mxu0 0
      %460 = vmatmul.mubr.bf16.gmra.mrb[0].mxu0 %v321
      %v461 = vpop.f32.mrb[0].mxu0
      %v462 = vadd.f32 0.0, %v461
      %v463 = vpop.f32.mrb[0].mxu0
      %v464 = vpop.f32.mrb[0].mxu0
      %v465 = vadd.f32 0.0, %v464
      %v466 = vpop.f32.mrb[0].mxu0
      %467 = vmatprep.mubr.bf16.mxu0 0
      %468 = vmatmul.mubr.bf16.gmra.mrb[0].mxu0 %v322
      %v469 = vpop.f32.mrb[0].mxu0
      %v470 = vadd.f32 0.0, %v469
      %v471 = vpop.f32.mrb[0].mxu0
      %v472 = vpop.f32.mrb[0].mxu0
      %v473 = vadd.f32 0.0, %v472
      %v474 = vpop.f32.mrb[0].mxu0
      %475 = vdwg.mxu0
      %v476 = vld [vmem:[%s242] sm:$0xff]
      %v477 = vld [vmem:[%s242 + $0x8] sm:$0xff]
      %v480 = vcombine.high %v476, %v476
      %v482 = vunpack.c.l.s4 1966171168
      %v483 = vunpack.c.0.s8 %v482
      %v484 = vlaneseq
      %v485 = vshrl.u32 %v484, 7
      %v486 = vsub.s32 %v483, %v485
      %v487 = vrot.slane %v476, %v486
      %v489 = vunpack.c.l.s4 1966171168
      %v490 = vunpack.c.0.s8 %v489
      %v491 = vlaneseq
      %v492 = vshrl.u32 %v491, 7
      %v493 = vsub.s32 %v490, %v492
      %v494 = vrot.slane %v480, %v493
      %v495 = vcombine.high %v487, %v487
      %v496 = vcombine.high %v494, %v494
      %v498 = vunpack.c.l.s4 1966171168
      %v499 = vunpack.c.0.s8 %v498
      %v500 = vlaneseq
      %v501 = vshrl.u32 %v500, 7
      %v502 = vsub.s32 %v499, %v501
      %v503 = vrot.slane %v487, %v502
      %v505 = vunpack.c.l.s4 1966171168
      %v506 = vunpack.c.0.s8 %v505
      %v507 = vlaneseq
      %v508 = vshrl.u32 %v507, 7
      %v509 = vsub.s32 %v506, %v508
      %v510 = vrot.slane %v494, %v509
      %v512 = vunpack.c.l.s4 1966171168
      %v513 = vunpack.c.0.s8 %v512
      %v514 = vlaneseq
      %v515 = vshrl.u32 %v514, 7
      %v516 = vsub.s32 %v513, %v515
      %v517 = vrot.slane %v495, %v516
      %v519 = vunpack.c.l.s4 1966171168
      %v520 = vunpack.c.0.s8 %v519
      %v521 = vlaneseq
      %v522 = vshrl.u32 %v521, 7
      %v523 = vsub.s32 %v520, %v522
      %v524 = vrot.slane %v496, %v523
      %v525 = vcombine.high %v503, %v503
      %v526 = vcombine.high %v510, %v510
      %v527 = vcombine.high %v517, %v517
      %v528 = vcombine.high %v524, %v524
      %v529 = vcombine.high %v477, %v477
      %v531 = vunpack.c.l.s4 1966171168
      %v532 = vunpack.c.0.s8 %v531
      %v533 = vlaneseq
      %v534 = vshrl.u32 %v533, 7
      %v535 = vsub.s32 %v532, %v534
      %v536 = vrot.slane %v477, %v535
      %v538 = vunpack.c.l.s4 1966171168
      %v539 = vunpack.c.0.s8 %v538
      %v540 = vlaneseq
      %v541 = vshrl.u32 %v540, 7
      %v542 = vsub.s32 %v539, %v541
      %v543 = vrot.slane %v529, %v542
      %v544 = vcombine.high %v536, %v536
      %v545 = vcombine.high %v543, %v543
      %v547 = vunpack.c.l.s4 1966171168
      %v548 = vunpack.c.0.s8 %v547
      %v549 = vlaneseq
      %v550 = vshrl.u32 %v549, 7
      %v551 = vsub.s32 %v548, %v550
      %v552 = vrot.slane %v536, %v551
      %v554 = vunpack.c.l.s4 1966171168
      %v555 = vunpack.c.0.s8 %v554
      %v556 = vlaneseq
      %v557 = vshrl.u32 %v556, 7
      %v558 = vsub.s32 %v555, %v557
      %v559 = vrot.slane %v543, %v558
      %v561 = vunpack.c.l.s4 1966171168
      %v562 = vunpack.c.0.s8 %v561
      %v563 = vlaneseq
      %v564 = vshrl.u32 %v563, 7
      %v565 = vsub.s32 %v562, %v564
      %v566 = vrot.slane %v544, %v565
      %v568 = vunpack.c.l.s4 1966171168
      %v569 = vunpack.c.0.s8 %v568
      %v570 = vlaneseq
      %v571 = vshrl.u32 %v570, 7
      %v572 = vsub.s32 %v569, %v571
      %v573 = vrot.slane %v545, %v572
      %v574 = vcombine.high %v552, %v552
      %v575 = vcombine.high %v559, %v559
      %v576 = vcombine.high %v566, %v566
      %v577 = vcombine.high %v573, %v573
      %v578 = vlaneseq
      %v579 = vshrl.u32 %v578, 7
      %v580 = vsub.s32 0, %v579
      %v581 = vrot.slane %v503, %v580
      %v582 = vlaneseq
      %v583 = vshrl.u32 %v582, 7
      %v584 = vsub.s32 0, %v583
      %v585 = vrot.slane %v517, %v584
      %v586 = vlaneseq
      %v587 = vshrl.u32 %v586, 7
      %v588 = vsub.s32 0, %v587
      %v589 = vrot.slane %v525, %v588
      %v590 = vlaneseq
      %v591 = vshrl.u32 %v590, 7
      %v592 = vsub.s32 0, %v591
      %v593 = vrot.slane %v527, %v592
      %v594 = vlaneseq
      %v595 = vshrl.u32 %v594, 7
      %v596 = vsub.s32 0, %v595
      %v597 = vrot.slane %v510, %v596
      %v598 = vlaneseq
      %v599 = vshrl.u32 %v598, 7
      %v600 = vsub.s32 0, %v599
      %v601 = vrot.slane %v524, %v600
      %v602 = vlaneseq
      %v603 = vshrl.u32 %v602, 7
      %v604 = vsub.s32 0, %v603
      %v605 = vrot.slane %v526, %v604
      %v606 = vlaneseq
      %v607 = vshrl.u32 %v606, 7
      %v608 = vsub.s32 0, %v607
      %v609 = vrot.slane %v528, %v608
      %v610 = vlaneseq
      %v611 = vshrl.u32 %v610, 7
      %v612 = vsub.s32 0, %v611
      %v613 = vrot.slane %v552, %v612
      %v614 = vlaneseq
      %v615 = vshrl.u32 %v614, 7
      %v616 = vsub.s32 0, %v615
      %v617 = vrot.slane %v566, %v616
      %v618 = vlaneseq
      %v619 = vshrl.u32 %v618, 7
      %v620 = vsub.s32 0, %v619
      %v621 = vrot.slane %v574, %v620
      %v622 = vlaneseq
      %v623 = vshrl.u32 %v622, 7
      %v624 = vsub.s32 0, %v623
      %v625 = vrot.slane %v576, %v624
      %v626 = vlaneseq
      %v627 = vshrl.u32 %v626, 7
      %v628 = vsub.s32 0, %v627
      %v629 = vrot.slane %v559, %v628
      %v630 = vlaneseq
      %v631 = vshrl.u32 %v630, 7
      %v632 = vsub.s32 0, %v631
      %v633 = vrot.slane %v573, %v632
      %v634 = vlaneseq
      %v635 = vshrl.u32 %v634, 7
      %v636 = vsub.s32 0, %v635
      %v637 = vrot.slane %v575, %v636
      %v638 = vlaneseq
      %v639 = vshrl.u32 %v638, 7
      %v640 = vsub.s32 0, %v639
      %v641 = vrot.slane %v577, %v640
      %v658 = vadd.f32 %v414, %v581
      %v659 = vadd.f32 %v417, %v585
      %v660 = vadd.f32 %v422, %v589
      %v661 = vadd.f32 %v425, %v593
      %v662 = vadd.f32 %v430, %v597
      %v663 = vadd.f32 %v433, %v601
      %v664 = vadd.f32 %v438, %v605
      %v665 = vadd.f32 %v441, %v609
      %v666 = vadd.f32 %v446, %v613
      %v667 = vadd.f32 %v449, %v617
      %v668 = vadd.f32 %v454, %v621
      %v669 = vadd.f32 %v457, %v625
      %v670 = vadd.f32 %v462, %v629
      %v671 = vadd.f32 %v465, %v633
      %v672 = vadd.f32 %v470, %v637
      %v673 = vadd.f32 %v473, %v641
      %v674 = vmax.f32 %v658, 0.0
      %v675 = vmax.f32 %v659, 0.0
      %v676 = vmax.f32 %v660, 0.0
      %v677 = vmax.f32 %v661, 0.0
      %v678 = vmax.f32 %v662, 0.0
      %v679 = vmax.f32 %v663, 0.0
      %v680 = vmax.f32 %v664, 0.0
      %v681 = vmax.f32 %v665, 0.0
      %v682 = vmax.f32 %v666, 0.0
      %v683 = vmax.f32 %v667, 0.0
      %v684 = vmax.f32 %v668, 0.0
      %v685 = vmax.f32 %v669, 0.0
      %v686 = vmax.f32 %v670, 0.0
      %v687 = vmax.f32 %v671, 0.0
      %v688 = vmax.f32 %v672, 0.0
      %v689 = vmax.f32 %v673, 0.0
      %v690 = vpack.c.bf16 %v675, %v674
      %v691 = vpack.c.bf16 %v677, %v676
      %v692 = vpack.c.bf16 %v679, %v678
      %v693 = vpack.c.bf16 %v681, %v680
      %v694 = vpack.c.bf16 %v683, %v682
      %v695 = vpack.c.bf16 %v685, %v684
      %v696 = vpack.c.bf16 %v687, %v686
      %v697 = vpack.c.bf16 %v689, %v688
      %v698 = vld [vmem:[%s3] sm:$0xf]
      %v699 = vld [vmem:[%s3 + $0x4] sm:$0xf]
      %v700 = vld [vmem:[%s3 + $0x8] sm:$0xf]
      %v701 = vld [vmem:[%s3 + $0xc] sm:$0xf]
      %v702 = vld [vmem:[%s3 + $0x10] sm:$0xf]
      %v703 = vld [vmem:[%s3 + $0x14] sm:$0xf]
      %v704 = vld [vmem:[%s3 + $0x18] sm:$0xf]
      %v705 = vld [vmem:[%s3 + $0x1c] sm:$0xf]
      %v706 = vld [vmem:[%s3 + $0x20] sm:$0xf]
      %v707 = vld [vmem:[%s3 + $0x24] sm:$0xf]
      %v708 = vld [vmem:[%s3 + $0x28] sm:$0xf]
      %v709 = vld [vmem:[%s3 + $0x2c] sm:$0xf]
      %v710 = vld [vmem:[%s3 + $0x30] sm:$0xf]
      %v711 = vld [vmem:[%s3 + $0x34] sm:$0xf]
      %v712 = vld [vmem:[%s3 + $0x38] sm:$0xf]
      %v713 = vld [vmem:[%s3 + $0x3c] sm:$0xf]
      %v714 = vld [vmem:[%s4] sm:$0x1]
      %v716 = vlaneseq
      %v717 = vshrl.u32 %v716, 7
      %v718 = vsub.s32 0, %v717
      %v719 = vrot.slane %v714, %v718
      %v737 = vunpack.c.l.b16 %v698
      %v738 = vunpack.c.l.b16 %v699
      %v739 = vunpack.c.l.b16 %v700
      %v740 = vunpack.c.l.b16 %v701
      %v741 = vunpack.c.l.b16 %v702
      %v742 = vunpack.c.l.b16 %v703
      %v743 = vunpack.c.l.b16 %v704
      %v744 = vunpack.c.l.b16 %v705
      %v745 = vunpack.c.l.b16 %v706
      %v746 = vunpack.c.l.b16 %v707
      %v747 = vunpack.c.l.b16 %v708
      %v748 = vunpack.c.l.b16 %v709
      %v749 = vunpack.c.l.b16 %v710
      %v750 = vunpack.c.l.b16 %v711
      %v751 = vunpack.c.l.b16 %v712
      %v752 = vunpack.c.l.b16 %v713
      %v753 = vpack.c.b16 %v738, %v737
      %v754 = vpack.c.b16 %v740, %v739
      %v755 = vpack.c.b16 %v742, %v741
      %v756 = vpack.c.b16 %v744, %v743
      %v757 = vpack.c.b16 %v746, %v745
      %v758 = vpack.c.b16 %v748, %v747
      %v759 = vpack.c.b16 %v750, %v749
      %v760 = vpack.c.b16 %v752, %v751
      %769 = vmatprep.subr.bf16.mxu0 0
      %770 = vmatpush1.bf16.msra.mxu0 %v753
      %771 = vmatprep.subr.bf16.mxu0 0
      %772 = vmatpush1.bf16.msra.mxu0 %v754
      %773 = vmatprep.subr.bf16.mxu0 0
      %774 = vmatpush1.bf16.msra.mxu0 %v755
      %775 = vmatprep.subr.bf16.mxu0 0
      %776 = vmatpush1.bf16.msra.mxu0 %v756
      %777 = vmatprep.subr.bf16.mxu0 0
      %778 = vmatpush1.bf16.msra.mxu0 %v757
      %779 = vmatprep.subr.bf16.mxu0 0
      %780 = vmatpush1.bf16.msra.mxu0 %v758
      %781 = vmatprep.subr.bf16.mxu0 0
      %782 = vmatpush1.bf16.msra.mxu0 %v759
      %783 = vmatprep.subr.bf16.mxu0 0
      %784 = vmatpush1.bf16.msra.mxu0 %v760
      %785 = vmatprep.subr.bf16.mxu0 0
      %786 = vmatpush1.bf16.msra.mxu0 0
      %787 = vmatprep.subr.bf16.mxu0 0
      %788 = vmatpush1.bf16.msra.mxu0 0
      %789 = vmatprep.subr.bf16.mxu0 0
      %790 = vmatpush1.bf16.msra.mxu0 0
      %791 = vmatprep.subr.bf16.mxu0 0
      %792 = vmatpush1.bf16.msra.mxu0 0
      %793 = vmatprep.subr.bf16.mxu0 0
      %794 = vmatpush1.bf16.msra.mxu0 0
      %795 = vmatprep.subr.bf16.mxu0 0
      %796 = vmatpush1.bf16.msra.mxu0 0
      %797 = vmatprep.subr.bf16.mxu0 0
      %798 = vmatpush1.bf16.msra.mxu0 0
      %799 = vmatprep.subr.bf16.mxu0 0
      %800 = vmatpush1.bf16.msra.mxu0 0
      %801 = vmatprep.mubr.bf16.mxu0 0
      %802 = vmatmul.mubr.bf16.gmra.mrb[0].mxu0 %v690
      %v803 = vpop.f32.mrb[0].mxu0
      %v804 = vadd.f32 %v719, %v803
      %v805 = vpop.f32.mrb[0].mxu0
      %v806 = vpop.f32.mrb[0].mxu0
      %v807 = vadd.f32 %v719, %v806
      %v808 = vpop.f32.mrb[0].mxu0
      %809 = vmatprep.mubr.bf16.mxu0 0
      %810 = vmatmul.mubr.bf16.gmra.mrb[0].mxu0 %v691
      %v811 = vpop.f32.mrb[0].mxu0
      %v812 = vadd.f32 %v719, %v811
      %v813 = vpop.f32.mrb[0].mxu0
      %v814 = vpop.f32.mrb[0].mxu0
      %v815 = vadd.f32 %v719, %v814
      %v816 = vpop.f32.mrb[0].mxu0
      %817 = vmatprep.mubr.bf16.mxu0 0
      %818 = vmatmul.mubr.bf16.gmra.mrb[0].mxu0 %v692
      %v819 = vpop.f32.mrb[0].mxu0
      %v820 = vadd.f32 %v719, %v819
      %v821 = vpop.f32.mrb[0].mxu0
      %v822 = vpop.f32.mrb[0].mxu0
      %v823 = vadd.f32 %v719, %v822
      %v824 = vpop.f32.mrb[0].mxu0
      %825 = vmatprep.mubr.bf16.mxu0 0
      %826 = vmatmul.mubr.bf16.gmra.mrb[0].mxu0 %v693
      %v827 = vpop.f32.mrb[0].mxu0
      %v828 = vadd.f32 %v719, %v827
      %v829 = vpop.f32.mrb[0].mxu0
      %v830 = vpop.f32.mrb[0].mxu0
      %v831 = vadd.f32 %v719, %v830
      %v832 = vpop.f32.mrb[0].mxu0
      %833 = vmatprep.mubr.bf16.mxu0 0
      %834 = vmatmul.mubr.bf16.gmra.mrb[0].mxu0 %v694
      %v835 = vpop.f32.mrb[0].mxu0
      %v836 = vadd.f32 %v719, %v835
      %v837 = vpop.f32.mrb[0].mxu0
      %v838 = vpop.f32.mrb[0].mxu0
      %v839 = vadd.f32 %v719, %v838
      %v840 = vpop.f32.mrb[0].mxu0
      %841 = vmatprep.mubr.bf16.mxu0 0
      %842 = vmatmul.mubr.bf16.gmra.mrb[0].mxu0 %v695
      %v843 = vpop.f32.mrb[0].mxu0
      %v844 = vadd.f32 %v719, %v843
      %v845 = vpop.f32.mrb[0].mxu0
      %v846 = vpop.f32.mrb[0].mxu0
      %v847 = vadd.f32 %v719, %v846
      %v848 = vpop.f32.mrb[0].mxu0
      %849 = vmatprep.mubr.bf16.mxu0 0
      %850 = vmatmul.mubr.bf16.gmra.mrb[0].mxu0 %v696
      %v851 = vpop.f32.mrb[0].mxu0
      %v852 = vadd.f32 %v719, %v851
      %v853 = vpop.f32.mrb[0].mxu0
      %v854 = vpop.f32.mrb[0].mxu0
      %v855 = vadd.f32 %v719, %v854
      %v856 = vpop.f32.mrb[0].mxu0
      %857 = vmatprep.mubr.bf16.mxu0 0
      %858 = vmatmul.mubr.bf16.gmra.mrb[0].mxu0 %v697
      %v859 = vpop.f32.mrb[0].mxu0
      %v860 = vadd.f32 %v719, %v859
      %v861 = vpop.f32.mrb[0].mxu0
      %v862 = vpop.f32.mrb[0].mxu0
      %v863 = vadd.f32 %v719, %v862
      %v864 = vpop.f32.mrb[0].mxu0
      %865 = vdwg.mxu0
      %v866 = vmax.f32 %v804, 0.0
      %v867 = vmax.f32 %v807, 0.0
      %v868 = vmax.f32 %v812, 0.0
      %v869 = vmax.f32 %v815, 0.0
      %v870 = vmax.f32 %v820, 0.0
      %v871 = vmax.f32 %v823, 0.0
      %v872 = vmax.f32 %v828, 0.0
      %v873 = vmax.f32 %v831, 0.0
      %v874 = vmax.f32 %v836, 0.0
      %v875 = vmax.f32 %v839, 0.0
      %v876 = vmax.f32 %v844, 0.0
      %v877 = vmax.f32 %v847, 0.0
      %v878 = vmax.f32 %v852, 0.0
      %v879 = vmax.f32 %v855, 0.0
      %v880 = vmax.f32 %v860, 0.0
      %v881 = vmax.f32 %v863, 0.0
      %v882 = vrot.slane %v866, 4
      %v883 = vmax.f32 %v866, %v882
      %v884 = vrot.slane %v883, 2
      %v885 = vmax.f32 %v883, %v884
      %v886 = vrot.slane %v885, 1
      %v887 = vmax.f32 %v885, %v886
      %v888 = vrot.slane %v867, 4
      %v889 = vmax.f32 %v867, %v888
      %v890 = vrot.slane %v889, 2
      %v891 = vmax.f32 %v889, %v890
      %v892 = vrot.slane %v891, 1
      %v893 = vmax.f32 %v891, %v892
      %v894 = vrot.slane %v868, 4
      %v895 = vmax.f32 %v868, %v894
      %v896 = vrot.slane %v895, 2
      %v897 = vmax.f32 %v895, %v896
      %v898 = vrot.slane %v897, 1
      %v899 = vmax.f32 %v897, %v898
      %v900 = vrot.slane %v869, 4
      %v901 = vmax.f32 %v869, %v900
      %v902 = vrot.slane %v901, 2
      %v903 = vmax.f32 %v901, %v902
      %v904 = vrot.slane %v903, 1
      %v905 = vmax.f32 %v903, %v904
      %v906 = vrot.slane %v870, 4
      %v907 = vmax.f32 %v870, %v906
      %v908 = vrot.slane %v907, 2
      %v909 = vmax.f32 %v907, %v908
      %v910 = vrot.slane %v909, 1
      %v911 = vmax.f32 %v909, %v910
      %v912 = vrot.slane %v871, 4
      %v913 = vmax.f32 %v871, %v912
      %v914 = vrot.slane %v913, 2
      %v915 = vmax.f32 %v913, %v914
      %v916 = vrot.slane %v915, 1
      %v917 = vmax.f32 %v915, %v916
      %v918 = vrot.slane %v872, 4
      %v919 = vmax.f32 %v872, %v918
      %v920 = vrot.slane %v919, 2
      %v921 = vmax.f32 %v919, %v920
      %v922 = vrot.slane %v921, 1
      %v923 = vmax.f32 %v921, %v922
      %v924 = vrot.slane %v873, 4
      %v925 = vmax.f32 %v873, %v924
      %v926 = vrot.slane %v925, 2
      %v927 = vmax.f32 %v925, %v926
      %v928 = vrot.slane %v927, 1
      %v929 = vmax.f32 %v927, %v928
      %v930 = vrot.slane %v874, 4
      %v931 = vmax.f32 %v874, %v930
      %v932 = vrot.slane %v931, 2
      %v933 = vmax.f32 %v931, %v932
      %v934 = vrot.slane %v933, 1
      %v935 = vmax.f32 %v933, %v934
      %v936 = vrot.slane %v875, 4
      %v937 = vmax.f32 %v875, %v936
      %v938 = vrot.slane %v937, 2
      %v939 = vmax.f32 %v937, %v938
      %v940 = vrot.slane %v939, 1
      %v941 = vmax.f32 %v939, %v940
      %v942 = vrot.slane %v876, 4
      %v943 = vmax.f32 %v876, %v942
      %v944 = vrot.slane %v943, 2
      %v945 = vmax.f32 %v943, %v944
      %v946 = vrot.slane %v945, 1
      %v947 = vmax.f32 %v945, %v946
      %v948 = vrot.slane %v877, 4
      %v949 = vmax.f32 %v877, %v948
      %v950 = vrot.slane %v949, 2
      %v951 = vmax.f32 %v949, %v950
      %v952 = vrot.slane %v951, 1
      %v953 = vmax.f32 %v951, %v952
      %v954 = vrot.slane %v878, 4
      %v955 = vmax.f32 %v878, %v954
      %v956 = vrot.slane %v955, 2
      %v957 = vmax.f32 %v955, %v956
      %v958 = vrot.slane %v957, 1
      %v959 = vmax.f32 %v957, %v958
      %v960 = vrot.slane %v879, 4
      %v961 = vmax.f32 %v879, %v960
      %v962 = vrot.slane %v961, 2
      %v963 = vmax.f32 %v961, %v962
      %v964 = vrot.slane %v963, 1
      %v965 = vmax.f32 %v963, %v964
      %v966 = vrot.slane %v880, 4
      %v967 = vmax.f32 %v880, %v966
      %v968 = vrot.slane %v967, 2
      %v969 = vmax.f32 %v967, %v968
      %v970 = vrot.slane %v969, 1
      %v971 = vmax.f32 %v969, %v970
      %v972 = vrot.slane %v881, 4
      %v973 = vmax.f32 %v881, %v972
      %v974 = vrot.slane %v973, 2
      %v975 = vmax.f32 %v973, %v974
      %v976 = vrot.slane %v975, 1
      %v977 = vmax.f32 %v975, %v976
      %vm994 = vcmask 1041409
      %v995 = vsel %vm994, %v893, %v887
      %vm996 = vcmask 1042434
      %v997 = vsel %vm996, %v899, %v995
      %vm998 = vcmask 1043459
      %v999 = vsel %vm998, %v905, %v997
      %vm1000 = vcmask 1044484
      %v1001 = vsel %vm1000, %v911, %v999
      %vm1002 = vcmask 1045509
      %v1003 = vsel %vm1002, %v917, %v1001
      %vm1004 = vcmask 1046534
      %v1005 = vsel %vm1004, %v923, %v1003
      %vm1006 = vcmask 1047559
      %v1007 = vsel %vm1006, %v929, %v1005
      %v1008 = vsel %vm994, %v941, %v935
      %v1009 = vsel %vm996, %v947, %v1008
      %v1010 = vsel %vm998, %v953, %v1009
      %v1011 = vsel %vm1000, %v959, %v1010
      %v1012 = vsel %vm1002, %v965, %v1011
      %v1013 = vsel %vm1004, %v971, %v1012
      %v1014 = vsel %vm1006, %v977, %v1013
      %1017 = vst [vmem:[%s248] sm:$0xff] %v1007
      %1018 = vst [vmem:[%s248 + $0x8] sm:$0xff] %v1014
      %s1019 = smul.u32 2, %s16
      %p1020 = scmp.lt.s32.totalorder %s1019, 3
      %s1021 = scalar_select %p1020, %s1019, 3
      %s1022 = smul.addr %s1021, 8
      %s1023 = scalar_lea.vmem %s5, %s1022
      // Predicated region
      $region41: #{base_point_sa_forward.1} parent=39 // pred_check
        %p1024 = pneg %p149
      $region42: #{base_point_sa_forward.1} parent=39 // pred_check_branch
        %1026 = sbr.rel (%p1024) target = $region44
      $region43: #{base_point_sa_forward.1} parent=39 // pred_region
        %s1027 = smul.u32 2, %s16
      $region44: #{base_point_sa_forward.1} parent=39 // pred_fallthru
        _
    $region40: #{base_point_sa_forward.1} parent=5 // pred_fallthru
      _
    %p1028 = scmp.le.s32.totalorder 2, %s11
    // Predicated region
    $region45: #{base_point_sa_forward.1} parent=5 // pred_check
      %p1029 = pneg %p1028
    $region46: #{base_point_sa_forward.1} parent=5 // pred_check_branch
      %1031 = sbr.rel (%p1029) target = $region48
    $region47: #{base_point_sa_forward.1} parent=5 // pred_region
      %s1032 = ssub.s32 %s11, 2
      // Predicated region
      $region49: #{base_point_sa_forward.1} parent=47 // pred_check
        %p1033 = pneg %p155
      $region50: #{base_point_sa_forward.1} parent=47 // pred_check_branch
        %1035 = sbr.rel (%p1033) target = $region52
      $region51: #{base_point_sa_forward.1} parent=47 // pred_region
        %s1036 = smul.u32 2, %s17
        %p1037 = scmp.lt.s32.totalorder %s1036, 3
        %s1038 = scalar_select %p1037, %s1036, 3
        %s1039 = smul.addr %s1038, 8
        %s1040 = scalar_lea.vmem %s5, %s1039
      $region52: #{base_point_sa_forward.1} parent=47 // pred_fallthru
        _
    $region48: #{base_point_sa_forward.1} parent=5 // pred_fallthru
      _
  $region6: #{base_point_sa_forward.1} parent=0 // loop_footer
    %s15 = sadd.s32 1, %s11
  $region7: #{base_point_sa_forward.1} parent=0 // loop_footer_branch
    %10 = sbr.rel target = $region3
  $region8: #{base_point_sa_forward.1} parent=0 // loop_exit
    _

</llo_original>
